<compile_context>
chip_gen: v7x
topology: tpu7x:2x2x1
jax: 0.10.0
libtpu: 0.0.40
codegen_flags: <defaults>
</compile_context>

<pallas_src>
from functools import partial

import jax
import jax.numpy as jnp
from jax import lax
from jax.experimental import pallas as pl
from jax.experimental.pallas import tpu as pltpu


def _implicit_mul_c_kernel(x_ref, ad_ref, cb_ref, o_ref, *, inv_hw, tb, c_dim):
    # x_ref  : (TB, C, HW)   TB batch elements of the flattened input
    # ad_ref : (C+1, C, C)   folded projection [A; d] reshaped to (·, C, C)
    # cb_ref : (C+1, 1)      folded offsets   [cvec; e]
    # o_ref  : (TB, C, HW)
    xm = x_ref[...]                                              # (TB, C, HW)

    # gram[b] = x[b] @ x[b].T / (H*W)  -- one batched MXU matmul for the block
    gram = lax.dot_general(
        xm, xm, (((2,), (2,)), ((0,), (0,))),
        preferred_element_type=jnp.float32) * inv_hw             # (TB, C, C)

    ad = ad_ref[...]                                             # (C+1, C, C)
    cb = cb_ref[...]                                             # (C+1, 1)

    for b in range(tb):                                          # static unroll (tb small)
        gb = gram[b]                                             # (C, C)
        # comb[n] = sum_{i,j} AD[n,i,j] * gram_b[i,j] + cb[n]
        comb = jnp.sum(jnp.sum(ad * gb[None, :, :], axis=2),
                       axis=1, keepdims=True) + cb               # (C+1, 1)
        num = comb[:c_dim]                                       # (C, 1)
        den = comb[c_dim:c_dim + 1] + 1e-12                      # (1, 1) scalar denom
        scale = num / den                                        # (C, 1)
        o_ref[b] = (scale * xm[b]).astype(o_ref.dtype)           # (C, HW)


def _choose_tb(B, C, HW, itemsize, vmem_budget_bytes):
    """Batch elements per grid step: VMEM-budgeted, divides B, >=2 grid steps."""
    per_elem = C * HW * itemsize
    # double-buffered input + output blocks => 4 live copies of the block
    max_tb_vmem = max(1, vmem_budget_bytes // (4 * per_elem))
    # keep >= 2 grid steps when B >= 2 (v7x: 2 TensorCores share the grid)
    cap = (B + 1) // 2 if B >= 2 else 1
    tb = int(max(1, min(B, max_tb_vmem, cap)))
    while B % tb != 0:   # avoid partial leading blocks
        tb -= 1
    return tb


def implicit_mul_c(x, imp, dyn_w, dyn_b, *, vmem_budget_bytes=8 * 1024 * 1024):
    """x: (B, C, H, W) f32; imp: (1, C, num_imp); dyn_w: (num_imp, C*C); dyn_b: (num_imp,)."""
    B, C, H, W = x.shape
    HW = H * W
    num_imp = dyn_w.shape[0]

    x_flat = x.reshape(B, C, HW)

    # ---- algebraic fold of dynamic_layer + imp matmul + normalisation ----
    imp2 = imp.reshape(C, num_imp).astype(jnp.float32)
    w = dyn_w.astype(jnp.float32)
    bvec = dyn_b.astype(jnp.float32)
    A = imp2 @ w                                    # (C, C*C)
    cvec = imp2 @ bvec.reshape(num_imp, 1)          # (C, 1)
    d = jnp.sum(w, axis=0, keepdims=True)           # (1, C*C)
    e = jnp.sum(bvec).reshape(1, 1)                 # (1, 1)
    AD = jnp.concatenate([A, d], axis=0).reshape(C + 1, C, C)   # (C+1, C, C)
    cb = jnp.concatenate([cvec, e], axis=0)                     # (C+1, 1)

    itemsize = jnp.dtype(x.dtype).itemsize
    tb = _choose_tb(B, C, HW, itemsize, vmem_budget_bytes)
    grid = (B // tb,)

    kernel = partial(_implicit_mul_c_kernel, inv_hw=1.0 / HW, tb=tb, c_dim=C)

    flops = 2 * B * C * C * HW + 2 * B * (C + 1) * C * C + 2 * B * C * HW
    bytes_accessed = 2 * B * C * HW * itemsize + (AD.size + cb.size) * 4

    out_flat = pl.pallas_call(
        kernel,
        out_shape=jax.ShapeDtypeStruct((B, C, HW), x.dtype),
        grid=grid,
        in_specs=[
            pl.BlockSpec((tb, C, HW), lambda i: (i, 0, 0)),
            pl.BlockSpec((C + 1, C, C), lambda i: (0, 0, 0)),
            pl.BlockSpec((C + 1, 1), lambda i: (0, 0)),
        ],
        out_specs=pl.BlockSpec((tb, C, HW), lambda i: (i, 0, 0)),
        compiler_params=pltpu.CompilerParams(
            dimension_semantics=("parallel",),
            vmem_limit_bytes=32 * 1024 * 1024),
        cost_estimate=pl.CostEstimate(
            flops=int(flops), transcendentals=0,
            bytes_accessed=int(bytes_accessed)),
    )(x_flat, AD, cb)

    return out_flat.reshape(B, C, H, W)


def implicit_mul_c_ref(x, imp, dyn_w, dyn_b):
    """Pure-JAX reference replicating the PyTorch forward."""
    B, C, H, W = x.shape
    HW = H * W
    xm = x.reshape(B, C, HW)
    gram = jnp.einsum('bck,bdk->bcd', xm, xm) / HW                 # (B, C, C)
    gram_flat = gram.reshape(B, C * C)
    params = gram_flat @ dyn_w.T + dyn_b                           # (B, num_imp)
    params = params[:, :, None]                                    # (B, num_imp, 1)
    params_n = params / (params.sum(axis=1, keepdims=True) + 1e-12)
    scale = jnp.matmul(imp, params_n)                              # (B, C, 1)
    return scale[:, :, :, None] * x


if __name__ == "__main__":
    # module hyper-params (small, consistent with the PyTorch module)
    B, C, H, W = 2, 4, 16, 16
    num_imp = 4

    key = jax.random.PRNGKey(0)
    k_x, k_imp, k_w, k_b = jax.random.split(key, 4)

    # deterministic parameter init mirroring the torch module's __init__:
    #   imp ~ Normal(mean=1.0, std=0.02), dynamic_layer = Linear(C*C, num_imp)
    imp = 1.0 + 0.02 * jax.random.normal(k_imp, (1, C, num_imp), dtype=jnp.float32)
    bound = 1.0 / jnp.sqrt(jnp.float32(C * C))
    dyn_w = jax.random.uniform(k_w, (num_imp, C * C), jnp.float32, -bound, bound)
    dyn_b = jax.random.uniform(k_b, (num_imp,), jnp.float32, -bound, bound)

    x = jax.random.normal(k_x, (B, C, H, W), dtype=jnp.float32)

    out = implicit_mul_c(x, imp, dyn_w, dyn_b)
    out = jax.block_until_ready(out)

    ref = implicit_mul_c_ref(x, imp, dyn_w, dyn_b)
    assert out.shape == x.shape
    assert jnp.allclose(out, ref, atol=1e-4, rtol=1e-4), "mismatch vs JAX reference"

    print("KERNEL_OK")
</pallas_src>

<mosaic_0001>
module attributes {stable_mosaic.version = 11 : i64} {
  func.func @_implicit_mul_c_kernel(%arg0: i32, %arg1: memref<1x4x256xf32, #tpu.memory_space<vmem>>, %arg2: memref<5x4x4xf32, #tpu.memory_space<vmem>>, %arg3: memref<5x1xf32, #tpu.memory_space<vmem>>, %arg4: memref<1x4x256xf32, #tpu.memory_space<vmem>>) attributes {dimension_semantics = [#tpu.dimension_semantics<parallel>], iteration_bounds = array<i64: 2>, scalar_prefetch = 0 : i64, scratch_operands = 0 : i64, tpu.core_type = #tpu.core_type<tc>, window_params = [{transform_indices = @transform_0, window_bounds = array<i64: 1, 4, 256>}, {pipeline_mode = #tpu.pipeline_mode<synchronous>, transform_indices = @transform_1, window_bounds = array<i64: 5, 4, 4>}, {pipeline_mode = #tpu.pipeline_mode<synchronous>, transform_indices = @transform_2, window_bounds = array<i64: 5, 1>}, {transform_indices = @transform_3, window_bounds = array<i64: 1, 4, 256>}]} {
    %c0 = arith.constant 0 : index
    %c0_0 = arith.constant 0 : index
    %c0_1 = arith.constant 0 : index
    %0 = vector.load %arg1[%c0, %c0_0, %c0_1] : memref<1x4x256xf32, #tpu.memory_space<vmem>>, vector<1x4x256xf32>
    %cst = arith.constant dense<0.000000e+00> : vector<1x4x4xf32>
    %1 = tpu.matmul %0, %0, %cst {dimension_numbers = #tpu.dot_dimension_numbers<[2], [2], [1], [1], [0, 0, 0, 1, 1, 1], [0], [0]>} : vector<1x4x256xf32>, vector<1x4x256xf32>, vector<1x4x4xf32> -> vector<1x4x4xf32>
    %cst_2 = arith.constant 3.906250e-03 : f32
    %2 = vector.broadcast %cst_2 : f32 to vector<1x4x4xf32>
    %3 = arith.mulf %1, %2 : vector<1x4x4xf32>
    %c0_3 = arith.constant 0 : index
    %c0_4 = arith.constant 0 : index
    %c0_5 = arith.constant 0 : index
    %4 = vector.load %arg2[%c0_3, %c0_4, %c0_5] : memref<5x4x4xf32, #tpu.memory_space<vmem>>, vector<5x4x4xf32>
    %c0_6 = arith.constant 0 : index
    %c0_7 = arith.constant 0 : index
    %5 = vector.load %arg3[%c0_6, %c0_7] : memref<5x1xf32, #tpu.memory_space<vmem>>, vector<5x1xf32>
    %6 = vector.shape_cast %3 : vector<1x4x4xf32> to vector<4x4xf32>
    %7 = vector.shape_cast %6 : vector<4x4xf32> to vector<1x4x4xf32>
    %8 = vector.broadcast %7 : vector<1x4x4xf32> to vector<5x4x4xf32>
    %9 = arith.mulf %4, %8 : vector<5x4x4xf32>
    %cst_8 = arith.constant dense<0.000000e+00> : vector<5x4xf32>
    %10 = vector.multi_reduction <add>, %9, %cst_8 [2] : vector<5x4x4xf32> to vector<5x4xf32>
    %cst_9 = arith.constant dense<0.000000e+00> : vector<5xf32>
    %11 = vector.multi_reduction <add>, %10, %cst_9 [1] : vector<5x4xf32> to vector<5xf32>
    %12 = vector.shape_cast %11 : vector<5xf32> to vector<5x1xf32>
    %13 = arith.addf %12, %5 : vector<5x1xf32>
    %14 = vector.extract_strided_slice %13 {offsets = [0, 0], sizes = [4, 1], strides = [1, 1]} : vector<5x1xf32> to vector<4x1xf32>
    %15 = vector.extract_strided_slice %13 {offsets = [4, 0], sizes = [1, 1], strides = [1, 1]} : vector<5x1xf32> to vector<1x1xf32>
    %cst_10 = arith.constant 9.99999996E-13 : f32
    %16 = vector.broadcast %cst_10 : f32 to vector<1x1xf32>
    %17 = arith.addf %15, %16 : vector<1x1xf32>
    %18 = vector.broadcast %17 : vector<1x1xf32> to vector<4x1xf32>
    %19 = arith.divf %14, %18 : vector<4x1xf32>
    %20 = vector.shape_cast %0 : vector<1x4x256xf32> to vector<4x256xf32>
    %21 = vector.broadcast %19 : vector<4x1xf32> to vector<4x256xf32>
    %22 = arith.mulf %21, %20 : vector<4x256xf32>
    %c0_11 = arith.constant 0 : index
    %c0_12 = arith.constant 0 : index
    %c0_13 = arith.constant 0 : index
    %23 = vector.load %arg4[%c0_11, %c0_12, %c0_13] : memref<1x4x256xf32, #tpu.memory_space<vmem>>, vector<1x4x256xf32>
    %24 = vector.shape_cast %23 : vector<1x4x256xf32> to vector<4x256xf32>
    %25 = vector.shape_cast %22 : vector<4x256xf32> to vector<1x4x256xf32>
    tpu.vector_store %arg4[%c0_11, %c0_12, %c0_13], %25 {strides = array<i32>} : memref<1x4x256xf32, #tpu.memory_space<vmem>>, vector<1x4x256xf32>,
    return
  }
  func.func @transform_0(%arg0: i32) -> (i32, i32, i32) {
    %c0_i32 = arith.constant 0 : i32
    %c0_i32_0 = arith.constant 0 : i32
    %c0_i32_1 = arith.constant 0 : i32
    return %arg0, %c0_i32, %c0_i32_0 : i32, i32, i32
  }
  func.func @transform_1(%arg0: i32) -> (i32, i32, i32) {
    %c0_i32 = arith.constant 0 : i32
    %c0_i32_0 = arith.constant 0 : i32
    %c0_i32_1 = arith.constant 0 : i32
    %c0_i32_2 = arith.constant 0 : i32
    return %c0_i32, %c0_i32_0, %c0_i32_1 : i32, i32, i32
  }
  func.func @transform_2(%arg0: i32) -> (i32, i32) {
    %c0_i32 = arith.constant 0 : i32
    %c0_i32_0 = arith.constant 0 : i32
    %c0_i32_1 = arith.constant 0 : i32
    return %c0_i32, %c0_i32_0 : i32, i32
  }
  func.func @transform_3(%arg0: i32) -> (i32, i32, i32) {
    %c0_i32 = arith.constant 0 : i32
    %c0_i32_0 = arith.constant 0 : i32
    %c0_i32_1 = arith.constant 0 : i32
    return %arg0, %c0_i32, %c0_i32_0 : i32, i32, i32
  }
}

</mosaic_0001>

<llo_original>
// kernel: tpu_custom_call.1
$region0: #{tpu_custom_call.1}
  #allocation0 [shape = 'u32[]', space=smem, size = 0x4, offset = 0x4, fixed_abs, tag = 'smem constant byte address 0x4 - core index']
  #allocation1 [shape = 'u32[144,128]{1,0:T(1,128)}', space=vmem, size = 0x12000, scoped, tag = 'internal scratch']
  %s0 = inlined_call_operand.vmem [shape: f32[2,4,256], index: 0, kind: input, shape index: {}]
  %s1 = inlined_call_operand.vmem [shape: f32[5,4,4], index: 1, kind: input, shape index: {}]
  %s2 = inlined_call_operand.vmem [shape: f32[5,1], index: 2, kind: input, shape index: {}]
  %s3 = inlined_call_operand.hbm [shape: f32[2,4,256], index: 3, kind: output, shape index: {}]
  %s4 = sld [smem:[#allocation0]]
  $region45: #{tpu_custom_call.1} parent=0
    _
  %s6 = ssub.s32 1, %s4
  %s7 = scalar_select 0, %s6, %s4
  $region1: #{tpu_custom_call.1} parent=0
    #allocation2 [shape = 'u8[8192]{0}', space=vmem, size = 0x2000, scoped, tag = 'output window, operand 0']
    #allocation3 [shape = 's32[2]{0}', space=sflag, size = 0x8, scoped, tag = 'scoped memory for tpu_custom_call.1']
    %8 = vsyncpa [#allocation3], 0
    %s9 = scalar_lea.sflag [#allocation3], 1
    %10 = vsyncpa %s9, 0
    loop: start=0, step=1, limit=4
    $region2: #{tpu_custom_call.1} parent=1 // loop_pre_header
      _
    $region3: #{tpu_custom_call.1} parent=1 // loop_header
      %s12 = sphi 0, %s16
      %p13 = scmp.ge.s32.totalorder %s12, 4
      %s22 = sphi 0, %s24
      %s25 = sphi 0, %s22
      %s26 = sphi 0, %s25
      %s42 = sphi 0, %s26
      %s46 = sphi 0, %s46
      %s48 = sphi 0, %s46
      %s49 = sphi 0, %s48
      %s63 = sphi 0, %s49
      %s67 = sphi 0, %s67
      %s69 = sphi 0, %s67
      %s70 = sphi 0, %s69
      %s84 = sphi 0, %s70
      %s90 = sphi 0, %s92
      %s93 = sphi 0, %s90
      %s94 = sphi 0, %s93
      %s110 = sphi 0, %s94
    $region4: #{tpu_custom_call.1} parent=1 // loop_header_branch
      %15 = sbr.rel (%p13) target = $region8
    $region5: #{tpu_custom_call.1} parent=1 // loop_body
      %s17 = ssub.s32 %s12, 1
      %s18 = ssub.s32 %s12, 2
      %s19 = sadd.s32 %s12, 1
      %s20 = ssub.s32 %s12, %s19
      %p21 = scmp.eq.s32.totalorder %s20, 0
      %s23 = sadd.s32 %s22, 1
      %s24 = scalar_select %p21, %s22, %s23
      %p27 = pneg %p21
      %p28 = scmp.eq.s32.totalorder %s12, 1
      %p29 = por %p27, %p28
      %p30 = scmp.ne.s32.totalorder %s22, %s25
      %p31 = scmp.eq.s32.totalorder %s12, 0
      %p32 = por %p30, %p31
      %p33 = scmp.ne.s32.totalorder %s22, %s25
      %p34 = scmp.eq.s32.totalorder %s17, 1
      %p35 = por %p33, %p34
      %p36 = scmp.ne.s32.totalorder %s25, %s26
      %p37 = scmp.eq.s32.totalorder %s17, 0
      %p38 = por %p36, %p37
      %p39 = scmp.ne.s32.totalorder %s25, %s26
      %p40 = scmp.eq.s32.totalorder %s18, 1
      %p41 = por %p39, %p40
      %p43 = scmp.ne.s32.totalorder %s26, %s42
      %p44 = scmp.eq.s32.totalorder %s18, 0
      %p45 = por %p43, %p44
      %s47 = sadd.s32 %s46, 1
      %p50 = scmp.eq.s32.totalorder %s12, 1
      %p51 = scmp.ne.s32.totalorder %s46, %s48
      %p52 = scmp.eq.s32.totalorder %s12, 0
      %p53 = por %p51, %p52
      %p54 = scmp.ne.s32.totalorder %s46, %s48
      %p55 = scmp.eq.s32.totalorder %s17, 1
      %p56 = por %p54, %p55
      %p57 = scmp.ne.s32.totalorder %s48, %s49
      %p58 = scmp.eq.s32.totalorder %s17, 0
      %p59 = por %p57, %p58
      %p60 = scmp.ne.s32.totalorder %s48, %s49
      %p61 = scmp.eq.s32.totalorder %s18, 1
      %p62 = por %p60, %p61
      %p64 = scmp.ne.s32.totalorder %s49, %s63
      %p65 = scmp.eq.s32.totalorder %s18, 0
      %p66 = por %p64, %p65
      %s68 = sadd.s32 %s67, 1
      %p71 = scmp.eq.s32.totalorder %s12, 1
      %p72 = scmp.ne.s32.totalorder %s67, %s69
      %p73 = scmp.eq.s32.totalorder %s12, 0
      %p74 = por %p72, %p73
      %p75 = scmp.ne.s32.totalorder %s67, %s69
      %p76 = scmp.eq.s32.totalorder %s17, 1
      %p77 = por %p75, %p76
      %p78 = scmp.ne.s32.totalorder %s69, %s70
      %p79 = scmp.eq.s32.totalorder %s17, 0
      %p80 = por %p78, %p79
      %p81 = scmp.ne.s32.totalorder %s69, %s70
      %p82 = scmp.eq.s32.totalorder %s18, 1
      %p83 = por %p81, %p82
      %p85 = scmp.ne.s32.totalorder %s70, %s84
      %p86 = scmp.eq.s32.totalorder %s18, 0
      %p87 = por %p85, %p86
      %s88 = ssub.s32 %s12, %s19
      %p89 = scmp.eq.s32.totalorder %s88, 0
      %s91 = sadd.s32 %s90, 1
      %s92 = scalar_select %p89, %s90, %s91
      %p95 = pneg %p89
      %p96 = scmp.eq.s32.totalorder %s12, 1
      %p97 = por %p95, %p96
      %p98 = scmp.ne.s32.totalorder %s90, %s93
      %p99 = scmp.eq.s32.totalorder %s12, 0
      %p100 = por %p98, %p99
      %p101 = scmp.ne.s32.totalorder %s90, %s93
      %p102 = scmp.eq.s32.totalorder %s17, 1
      %p103 = por %p101, %p102
      %p104 = scmp.ne.s32.totalorder %s93, %s94
      %p105 = scmp.eq.s32.totalorder %s17, 0
      %p106 = por %p104, %p105
      %p107 = scmp.ne.s32.totalorder %s93, %s94
      %p108 = scmp.eq.s32.totalorder %s18, 1
      %p109 = por %p107, %p108
      %p111 = scmp.ne.s32.totalorder %s94, %s110
      %p112 = scmp.eq.s32.totalorder %s18, 0
      %p113 = por %p111, %p112
      %p114 = scmp.le.s32.totalorder 1, %s12
      %p115 = scmp.lt.s32.totalorder %s12, 3
      %p116 = pnand %p114, %p115
      %p117 = pneg %p116
      // Predicated region
      $region9: #{tpu_custom_call.1} parent=5 // pred_check
        _
      $region10: #{tpu_custom_call.1} parent=5 // pred_check_branch
        %119 = sbr.rel (%p116) target = $region12
      $region11: #{tpu_custom_call.1} parent=5 // pred_region
        %s120 = ssub.s32 %s12, 1
        // Predicated region
        $region13: #{tpu_custom_call.1} parent=11 // pred_check
          %p121 = pneg %p59
        $region14: #{tpu_custom_call.1} parent=11 // pred_check_branch
          %123 = sbr.rel (%p121) target = $region16
        $region15: #{tpu_custom_call.1} parent=11 // pred_region
          _
        $region16: #{tpu_custom_call.1} parent=11 // pred_fallthru
          _
        // Predicated region
        $region17: #{tpu_custom_call.1} parent=11 // pred_check
          %p124 = pneg %p80
        $region18: #{tpu_custom_call.1} parent=11 // pred_check_branch
          %126 = sbr.rel (%p124) target = $region20
        $region19: #{tpu_custom_call.1} parent=11 // pred_region
          _
        $region20: #{tpu_custom_call.1} parent=11 // pred_fallthru
          _
      $region12: #{tpu_custom_call.1} parent=5 // pred_fallthru
        _
      %p127 = scmp.lt.s32.totalorder %s12, 2
      // Predicated region
      $region21: #{tpu_custom_call.1} parent=5 // pred_check
        %p128 = pneg %p127
      $region22: #{tpu_custom_call.1} parent=5 // pred_check_branch
        %130 = sbr.rel (%p128) target = $region24
      $region23: #{tpu_custom_call.1} parent=5 // pred_region
        // Predicated region
        $region25: #{tpu_custom_call.1} parent=23 // pred_check
          %p131 = pneg %p32
        $region26: #{tpu_custom_call.1} parent=23 // pred_check_branch
          %133 = sbr.rel (%p131) target = $region28
        $region27: #{tpu_custom_call.1} parent=23 // pred_region
          %p134 = scmp.lt.s32.totalorder %s12, 1
          %s135 = scalar_select %p134, %s12, 1
          %s136 = smul.addr %s135, 2
          %s137 = smul.addr %s136, 4
          %s138 = scalar_lea.vmem %s0, %s137
        $region28: #{tpu_custom_call.1} parent=23 // pred_fallthru
          _
      $region24: #{tpu_custom_call.1} parent=5 // pred_fallthru
        _
      %p139 = scmp.le.s32.totalorder 1, %s12
      %p140 = scmp.lt.s32.totalorder %s12, 3
      %p141 = pnand %p139, %p140
      %p142 = pneg %p141
      // Predicated region
      $region29: #{tpu_custom_call.1} parent=5 // pred_check
        _
      $region30: #{tpu_custom_call.1} parent=5 // pred_check_branch
        %144 = sbr.rel (%p141) target = $region32
      $region31: #{tpu_custom_call.1} parent=5 // pred_region
        %s145 = ssub.s32 %s12, 1
        %p146 = scmp.lt.s32.totalorder %s17, 1
        %s147 = scalar_select %p146, %s17, 1
        %s148 = smul.addr %s147, 2
        %s149 = smul.addr %s148, 4
        %s150 = scalar_lea.vmem %s0, %s149
        %p151 = pneg %p38
        %p152 = pneg %p35
        %p153 = pneg %p59
        %p154 = pneg %p56
        %p155 = pneg %p80
        %p156 = pneg %p77
        %p157 = pneg %p106
        %p158 = pneg %p103
        %s159 = sand.u32 %s93, 1
        %s160 = scalar_lea.sflag [#allocation3], %s159
        %s161 = sand.u32 %s93, 1
        %s162 = smul.addr %s161, 8
        %s163 = scalar_lea.vmem [#allocation2], %s162
        %p164 = scmp.lt.s32.totalorder %s17, 1
        %s165 = scalar_select %p164, %s17, 1
        %s166 = smul.addr %s165, 2
        %s167 = smul.addr %s166, 4
        %s168 = scalar_lea.vmem %s0, %s167
        %v169 = vld [vmem:[%s168] sm:$0xff]
        %v171 = vcombine.high %v169, %v169
        %173 = vmatprep.subr.mxu0 %v171
        %174 = vmatpush1.xpose.msra.mxu0 %v169
        %175 = vmatprep.subr.mxu0 0.0
        %176 = vmatpush1.xpose.msra.mxu0 0.0
        %177 = vmatprep.subr.mxu0 0.0
        %178 = vmatpush1.xpose.msra.mxu0 0.0
        %179 = vmatprep.subr.mxu0 0.0
        %180 = vmatpush1.xpose.msra.mxu0 0.0
        %181 = vmatprep.subr.mxu0 0.0
        %182 = vmatpush1.xpose.msra.mxu0 0.0
        %183 = vmatprep.subr.mxu0 0.0
        %184 = vmatpush1.xpose.msra.mxu0 0.0
        %185 = vmatprep.subr.mxu0 0.0
        %186 = vmatpush1.xpose.msra.mxu0 0.0
        %187 = vmatprep.subr.mxu0 0.0
        %188 = vmatpush1.xpose.msra.mxu0 0.0
        %189 = vmatprep.subr.mxu0 0.0
        %190 = vmatpush1.xpose.msra.mxu0 0.0
        %191 = vmatprep.subr.mxu0 0.0
        %192 = vmatpush1.xpose.msra.mxu0 0.0
        %193 = vmatprep.subr.mxu0 0.0
        %194 = vmatpush1.xpose.msra.mxu0 0.0
        %195 = vmatprep.subr.mxu0 0.0
        %196 = vmatpush1.xpose.msra.mxu0 0.0
        %197 = vmatprep.subr.mxu0 0.0
        %198 = vmatpush1.xpose.msra.mxu0 0.0
        %199 = vmatprep.subr.mxu0 0.0
        %200 = vmatpush1.xpose.msra.mxu0 0.0
        %201 = vmatprep.subr.mxu0 0.0
        %202 = vmatpush1.xpose.msra.mxu0 0.0
        %203 = vmatprep.subr.mxu0 0.0
        %204 = vmatpush1.xpose.msra.mxu0 0.0
        %205 = vmatprep.subr.mxu0 0.0
        %206 = vmatpush1.xpose.msra.mxu0 0.0
        %207 = vmatprep.subr.mxu0 0.0
        %208 = vmatpush1.xpose.msra.mxu0 0.0
        %209 = vmatprep.subr.mxu0 0.0
        %210 = vmatpush1.xpose.msra.mxu0 0.0
        %211 = vmatprep.subr.mxu0 0.0
        %212 = vmatpush1.xpose.msra.mxu0 0.0
        %213 = vmatprep.subr.mxu0 0.0
        %214 = vmatpush1.xpose.msra.mxu0 0.0
        %215 = vmatprep.subr.mxu0 0.0
        %216 = vmatpush1.xpose.msra.mxu0 0.0
        %217 = vmatprep.subr.mxu0 0.0
        %218 = vmatpush1.xpose.msra.mxu0 0.0
        %219 = vmatprep.subr.mxu0 0.0
        %220 = vmatpush1.xpose.msra.mxu0 0.0
        %221 = vmatprep.subr.mxu0 0.0
        %222 = vmatpush1.xpose.msra.mxu0 0.0
        %223 = vmatprep.subr.mxu0 0.0
        %224 = vmatpush1.xpose.msra.mxu0 0.0
        %225 = vmatprep.subr.mxu0 0.0
        %226 = vmatpush1.xpose.msra.mxu0 0.0
        %227 = vmatprep.subr.mxu0 0.0
        %228 = vmatpush1.xpose.msra.mxu0 0.0
        %229 = vmatprep.subr.mxu0 0.0
        %230 = vmatpush1.xpose.msra.mxu0 0.0
        %231 = vmatprep.subr.mxu0 0.0
        %232 = vmatpush1.xpose.msra.mxu0 0.0
        %233 = vmatprep.subr.mxu0 0.0
        %234 = vmatpush1.xpose.msra.mxu0 0.0
        %235 = vmatprep.subr.mxu0 0.0
        %236 = vmatpush1.xpose.msra.mxu0 0.0
        %237 = vmatprep.mubr.f32.mxu0 %v171
        %238 = vmatmul.mubr.f32.gmra.mrb[0].mxu0 %v169
        %v239 = vpop.f32.mrb[0].mxu0
        %v240 = vadd.f32 0.0, %v239
        %v241 = vpop.f32.mrb[0].mxu0
        %242 = vdwg.mxu0
        %v243 = vmul.f32 %v240, 0.00390625
        %v244 = vld [vmem:[%s1] sm:$0xf]
        %v245 = vld [vmem:[%s1 + $0x4] sm:$0xf]
        %v246 = vld [vmem:[%s1 + $0x8] sm:$0xf]
        %v247 = vld [vmem:[%s1 + $0xc] sm:$0xf]
        %v248 = vld [vmem:[%s1 + $0x10] sm:$0xf]
        %v249 = vld [vmem:[%s2] sm:$0x1f]
        %v250 = vmul.f32 %v244, %v243
        %v251 = vmul.f32 %v245, %v243
        %v252 = vmul.f32 %v246, %v243
        %v253 = vmul.f32 %v247, %v243
        %v254 = vmul.f32 %v248, %v243
        %vm255 = vcmask 27648
        %v256 = vsel %vm255, %v250, 0.0
        %257 = vadd.xlane.f32.xlu0 %v256
        %v258 = vpop.xlane.xlu0 %257
        %v259 = vsel %vm255, %v251, 0.0
        %260 = vadd.xlane.f32.xlu0 %v259
        %v261 = vpop.xlane.xlu0 %260
        %v262 = vsel %vm255, %v252, 0.0
        %263 = vadd.xlane.f32.xlu0 %v262
        %v264 = vpop.xlane.xlu0 %263
        %v265 = vsel %vm255, %v253, 0.0
        %266 = vadd.xlane.f32.xlu0 %v265
        %v267 = vpop.xlane.xlu0 %266
        %v268 = vsel %vm255, %v254, 0.0
        %269 = vadd.xlane.f32.xlu0 %v268
        %v270 = vpop.xlane.xlu0 %269
        %v276 = vlaneseq
        %v277 = vand.u32 %v276, 127
        %v278 = vlaneseq
        %v279 = vshrl.u32 %v278, 7
        %v280 = vsub.s32 %v277, %v279
        %v281 = vrot.slane %v258, %v280
        %v282 = vlaneseq
        %v283 = vshrl.u32 %v282, 7
        %v284 = vsub.s32 %v277, %v283
        %v285 = vrot.slane %v261, %v284
        %v286 = vlaneseq
        %v287 = vshrl.u32 %v286, 7
        %v288 = vsub.s32 %v277, %v287
        %v289 = vrot.slane %v264, %v288
        %v290 = vlaneseq
        %v291 = vshrl.u32 %v290, 7
        %v292 = vsub.s32 %v277, %v291
        %v293 = vrot.slane %v267, %v292
        %v294 = vlaneseq
        %v295 = vshrl.u32 %v294, 7
        %v296 = vsub.s32 %v277, %v295
        %v297 = vrot.slane %v270, %v296
        %vm298 = vcmask 1041409
        %v299 = vsel %vm298, %v285, %v281
        %vm300 = vcmask 1042434
        %v301 = vsel %vm300, %v289, %v299
        %vm302 = vcmask 1043459
        %v303 = vsel %vm302, %v293, %v301
        %vm304 = vcmask 1044484
        %v305 = vsel %vm304, %v297, %v303
        %vm307 = vcmask 28672
        %v308 = vsel %vm307, %v305, 0.0
        %309 = vadd.xlane.f32.xlu0 %v308
        %v310 = vpop.xlane.xlu0 %309
        %v311 = vadd.f32 %v310, %v249
        %v312 = vadd.f32 %v311, 1e-12
        %v313 = vlaneseq
        %v314 = vshrl.u32 %v313, 7
        %v315 = vsub.s32 4, %v314
        %v316 = vrot.slane %v312, %v315
        %v317 = vrcp.pop %v316
        %v318 = vmul.f32 %v311, %v317
        %320 = vset.pattern.permute.xlu0 0
        %321 = vperm.xlu0 %320, %v318
        %v322 = vpop.permute.xlu0 %321
        %v324 = vmul.f32 %v322, %v169
        %v325 = vmul.f32 %v322, %v171
        %v328 = vcombine.low %v324, %v325
        %330 = vst [vmem:[%s163] sm:$0xff] %v328
        %s331 = sand.u32 %s93, 1
        %s332 = scalar_lea.sflag [#allocation3], %s331
        %s333 = sand.u32 %s93, 1
        %s334 = smul.addr %s333, 8
        %s335 = scalar_lea.vmem [#allocation2], %s334
        // Predicated region
        $region33: #{tpu_custom_call.1} parent=31 // pred_check
          %p336 = pneg %p103
        $region34: #{tpu_custom_call.1} parent=31 // pred_check_branch
          %338 = sbr.rel (%p336) target = $region36
        $region35: #{tpu_custom_call.1} parent=31 // pred_region
          %s340 = ssub.s32 128, 128
          %341 = vsyncadd %s332, %s340
          %s342 = smul.addr %s17, 2
          %s343 = smul.addr %s342, 64
          %s344 = scalar_lea.hbm %s3, %s343
          %s346 = sshll.u32 %s335, 4
          %s347 = int_to_ptr.vmem [resolvable:$true] %s346
          %349 = dma.vmem_to_hbm [thread:$0]  %s347, 128, %s344, %s332
        $region36: #{tpu_custom_call.1} parent=31 // pred_fallthru
          _
      $region32: #{tpu_custom_call.1} parent=5 // pred_fallthru
        _
      %p350 = scmp.le.s32.totalorder 2, %s12
      // Predicated region
      $region37: #{tpu_custom_call.1} parent=5 // pred_check
        %p351 = pneg %p350
      $region38: #{tpu_custom_call.1} parent=5 // pred_check_branch
        %353 = sbr.rel (%p351) target = $region40
      $region39: #{tpu_custom_call.1} parent=5 // pred_region
        %s354 = ssub.s32 %s12, 2
        // Predicated region
        $region41: #{tpu_custom_call.1} parent=39 // pred_check
          %p355 = pneg %p109
        $region42: #{tpu_custom_call.1} parent=39 // pred_check_branch
          %357 = sbr.rel (%p355) target = $region44
        $region43: #{tpu_custom_call.1} parent=39 // pred_region
          %s358 = sand.u32 %s94, 1
          %s359 = scalar_lea.sflag [#allocation3], %s358
          %s360 = sand.u32 %s94, 1
          %s361 = smul.addr %s360, 8
          %s362 = scalar_lea.vmem [#allocation2], %s361
          %363 = dma.done %s359, 128
        $region44: #{tpu_custom_call.1} parent=39 // pred_fallthru
          _
      $region40: #{tpu_custom_call.1} parent=5 // pred_fallthru
        _
    $region6: #{tpu_custom_call.1} parent=1 // loop_footer
      %s16 = sadd.s32 1, %s12
    $region7: #{tpu_custom_call.1} parent=1 // loop_footer_branch
      %11 = sbr.rel target = $region3
    $region8: #{tpu_custom_call.1} parent=1 // loop_exit
      _
    %364 = vsyncpa [#allocation3], 1
    %s365 = scalar_lea.sflag [#allocation3], 1
    %366 = vsyncpa %s365, 1

</llo_original>
